<compile_context>
chip_gen: v6e
topology: v6e:2x2x1
jax: 0.10.0
libtpu: 0.0.40
codegen_flags: <defaults>
</compile_context>

<pallas_src>
import jax
import jax.numpy as jnp
from jax.experimental import pallas as pl
from jax.experimental.pallas import tpu as pltpu


def _round_up(x: int, m: int) -> int:
    return ((x + m - 1) // m) * m


def _broadcast_rows_kernel(vl_ref, o_ref):
    """vl_ref: (1, n_dims) resident constant row.  o_ref: (tile_m, n_dims) block."""
    # Cast the tiny row first (never the full tile), then sublane-broadcast and
    # store the whole output block in one shot.
    row = vl_ref[...].astype(o_ref.dtype)
    o_ref[...] = jnp.broadcast_to(row, o_ref.shape)


def constant_bounded_fcn(x: jax.Array,
                         lower_bound: jax.Array,
                         upper_bound: jax.Array,
                         v: jax.Array,
                         *,
                         tile_m: int = 8192,
                         small_batch_threshold: int = 4096,
                         out_dtype=jnp.float32) -> jax.Array:
    """Pallas implementation of ConstantBoundedFcn.forward.

    x:            (n_smps, d_in)  — only the leading dim is used (never DMA'd).
    lower_bound,
    upper_bound,
    v:            (n_dims,) each.
    Returns       (n_smps, n_dims) in `out_dtype` (float32 default, as the module).
    """
    n_smps = x.shape[0]
    n_dims = v.shape[0]

    lb = jnp.asarray(lower_bound, jnp.float32)
    ub = jnp.asarray(upper_bound, jnp.float32)
    vv = jnp.asarray(v, jnp.float32)

    # Exact module formula, computed once on n_dims elements (trivial XLA op).
    vl = (0.5 * jnp.tanh(vv) + 0.5) * (ub - lb) + lb          # (n_dims,) f32

    if n_smps == 0:
        return jnp.zeros((0, n_dims), dtype=out_dtype)

    if n_smps <= small_batch_threshold:
        # Tiny outputs: skip Pallas; XLA fuses the broadcast into the consumer.
        return jnp.broadcast_to(vl.astype(out_dtype)[None, :], (n_smps, n_dims))

    # ---------------- Pallas path (large n_smps): pure output fill ----------------
    vl_row = vl.astype(out_dtype).reshape(1, n_dims)

    # Tile rows: multiple of 8 (dense sublanes); cap so the grid has >= 2 steps
    # whenever possible so ("parallel",) can occupy both v7x TensorCores.
    tm = max(8, (int(tile_m) // 8) * 8)
    half = _round_up(pl.cdiv(n_smps, 2), 8)
    tm = min(tm, max(half, 8))

    grid = (pl.cdiv(n_smps, tm),)

    out = pl.pallas_call(
        _broadcast_rows_kernel,
        out_shape=jax.ShapeDtypeStruct((n_smps, n_dims), out_dtype),
        grid_spec=pltpu.PrefetchScalarGridSpec(
            num_scalar_prefetch=0,
            grid=grid,
            in_specs=[
                # Constant row: same block index every step -> stays resident,
                # one tiny DMA for the whole kernel.
                pl.BlockSpec((1, n_dims), lambda i: (0, 0)),
            ],
            # Output written directly in its final (n_smps, n_dims) layout; a
            # partial last block (n_smps % tm != 0) is masked by Pallas.
            out_specs=pl.BlockSpec((tm, n_dims), lambda i: (i, 0)),
        ),
        compiler_params=pltpu.CompilerParams(
            dimension_semantics=("parallel",),
        ),
    )(vl_row)
    return out


if __name__ == "__main__":
    key = jax.random.PRNGKey(0)
    kx, kv = jax.random.split(key, 2)

    # Small shapes consistent with the module: x is (n_smps, d_in); output dims
    # come from the bound vectors.  n_smps deliberately NOT a multiple of the tile
    # so the partial-last-block / >=2-grid-step path is exercised.
    n_smps, d_in, n_dims = 200, 8, 4
    x = jax.random.normal(kx, (n_smps, d_in), dtype=jnp.float32)

    lower_bound = jnp.array([-1.0, 0.0, 2.0, -3.0], dtype=jnp.float32)
    upper_bound = jnp.array([1.0, 1.0, 5.0, 3.0], dtype=jnp.float32)

    # Replicate ConstantBoundedFcn.set_value (host-side parameter setup): pick an
    # in-bounds init value and store v = arctanh(2*(init - lb)/(ub - lb) - 1).
    frac = jax.random.uniform(kv, (n_dims,), minval=0.1, maxval=0.9, dtype=jnp.float32)
    init_value = lower_bound + frac * (upper_bound - lower_bound)
    y01 = 2.0 * (init_value - lower_bound) / (upper_bound - lower_bound) - 1.0
    v = jnp.arctanh(y01)

    # Force the Pallas path at this small shape (threshold=0) so the kernel itself
    # is exercised; the default threshold would take the fused-XLA fast path.
    out = constant_bounded_fcn(x, lower_bound, upper_bound, v,
                               small_batch_threshold=0)
    out = jax.block_until_ready(out)

    # Reference forward (plain JAX, module formula).
    vl_ref = (0.5 * jnp.tanh(v) + 0.5) * (upper_bound - lower_bound) + lower_bound
    ref = jnp.broadcast_to(vl_ref[None, :], (n_smps, n_dims))

    assert out.shape == (n_smps, n_dims)
    assert out.dtype == jnp.float32
    assert jnp.allclose(out, ref, atol=1e-5, rtol=1e-5)
    # Round-trip through set_value: constant output equals the init value.
    assert jnp.allclose(out, jnp.broadcast_to(init_value[None, :], (n_smps, n_dims)),
                        atol=1e-4, rtol=1e-4)
    # Default small-batch fast path agrees with the kernel path.
    out_fast = jax.block_until_ready(constant_bounded_fcn(x, lower_bound, upper_bound, v))
    assert jnp.allclose(out_fast, out, atol=1e-6, rtol=1e-6)

    print("KERNEL_OK")
</pallas_src>

<mosaic_0001>
module attributes {stable_mosaic.version = 11 : i64} {
  func.func @_broadcast_rows_kernel(%arg0: i32, %arg1: memref<1x4xf32, #tpu.memory_space<vmem>>, %arg2: memref<104x4xf32, #tpu.memory_space<vmem>>) attributes {dimension_semantics = [#tpu.dimension_semantics<parallel>], iteration_bounds = array<i64: 2>, scalar_prefetch = 0 : i64, scratch_operands = 0 : i64, tpu.core_type = #tpu.core_type<tc>, window_params = [{pipeline_mode = #tpu.pipeline_mode<synchronous>, transform_indices = @transform_0, window_bounds = array<i64: 1, 4>}, {transform_indices = @transform_1, window_bounds = array<i64: 104, 4>}]} {
    %c0 = arith.constant 0 : index
    %c0_0 = arith.constant 0 : index
    %0 = vector.load %arg1[%c0, %c0_0] : memref<1x4xf32, #tpu.memory_space<vmem>>, vector<1x4xf32>
    %1 = vector.shape_cast %0 : vector<1x4xf32> to vector<1x4xf32>
    %2 = vector.broadcast %1 : vector<1x4xf32> to vector<104x4xf32>
    %c0_1 = arith.constant 0 : index
    %c0_2 = arith.constant 0 : index
    %3 = vector.load %arg2[%c0_1, %c0_2] : memref<104x4xf32, #tpu.memory_space<vmem>>, vector<104x4xf32>
    tpu.vector_store %arg2[%c0_1, %c0_2], %2 {strides = array<i32>} : memref<104x4xf32, #tpu.memory_space<vmem>>, vector<104x4xf32>,
    return
  }
  func.func @transform_0(%arg0: i32) -> (i32, i32) {
    %c0_i32 = arith.constant 0 : i32
    %c0_i32_0 = arith.constant 0 : i32
    %c0_i32_1 = arith.constant 0 : i32
    return %c0_i32, %c0_i32_0 : i32, i32
  }
  func.func @transform_1(%arg0: i32) -> (i32, i32) {
    %c0_i32 = arith.constant 0 : i32
    %c0_i32_0 = arith.constant 0 : i32
    return %arg0, %c0_i32 : i32, i32
  }
}

</mosaic_0001>

<llo_original>
// kernel: tpu_custom_call.1
$region0: #{tpu_custom_call.1}
  #allocation0 [shape = 'u32[]', space=smem, size = 0x4, offset = 0x4, fixed_abs, tag = 'smem constant byte address 0x4 - core index']
  #allocation1 [shape = 'u32[144,128]{1,0:T(1,128)}', space=vmem, size = 0x12000, scoped, tag = 'internal scratch']
  %s0 = inlined_call_operand.hbm [shape: f32[1,4], index: 0, kind: input, shape index: {}]
  %s1 = inlined_call_operand.vmem [shape: f32[200,4], index: 1, kind: output, shape index: {}]
  %s2 = sld [smem:[#allocation0]]
  $region89: #{tpu_custom_call.1} parent=0
    _
  %s4 = ssub.s32 1, %s2
  %s5 = scalar_select 0, %s4, %s2
  $region1: #{tpu_custom_call.1} parent=0
    #allocation2 [shape = 'u8[512]{0}', space=vmem, size = 0x400, scoped, tag = 'input window, operand 0, single buffered']
    #allocation3 [shape = 's32[2]{0}', space=sflag, size = 0x8, scoped, tag = 'scoped memory for tpu_custom_call.1']
    #allocation4 [shape = 'u8[106496]{0}', space=vmem, size = 0x1a000, scoped, tag = 'output window, operand 0']
    %6 = vsyncpa [#allocation3], 0
    loop: start=0, step=1, limit=4
    $region2: #{tpu_custom_call.1} parent=1 // loop_pre_header
      _
    $region3: #{tpu_custom_call.1} parent=1 // loop_header
      %s8 = sphi 0, %s12
      %p9 = scmp.ge.s32.totalorder %s8, 4
      %s16 = sphi 0, %s16
      %s18 = sphi 0, %s16
      %s19 = sphi 0, %s18
      %s33 = sphi 0, %s19
      %s39 = sphi 0, %s41
      %s42 = sphi 0, %s39
      %s43 = sphi 0, %s42
      %s59 = sphi 0, %s43
    $region4: #{tpu_custom_call.1} parent=1 // loop_header_branch
      %11 = sbr.rel (%p9) target = $region8
    $region5: #{tpu_custom_call.1} parent=1 // loop_body
      %s13 = ssub.s32 %s8, 1
      %s14 = ssub.s32 %s8, 2
      %s15 = sadd.s32 %s8, 1
      %s17 = sadd.s32 %s16, 1
      %p20 = scmp.eq.s32.totalorder %s8, 1
      %p21 = scmp.ne.s32.totalorder %s16, %s18
      %p22 = scmp.eq.s32.totalorder %s8, 0
      %p23 = por %p21, %p22
      %p24 = scmp.ne.s32.totalorder %s16, %s18
      %p25 = scmp.eq.s32.totalorder %s13, 1
      %p26 = por %p24, %p25
      %p27 = scmp.ne.s32.totalorder %s18, %s19
      %p28 = scmp.eq.s32.totalorder %s13, 0
      %p29 = por %p27, %p28
      %p30 = scmp.ne.s32.totalorder %s18, %s19
      %p31 = scmp.eq.s32.totalorder %s14, 1
      %p32 = por %p30, %p31
      %p34 = scmp.ne.s32.totalorder %s19, %s33
      %p35 = scmp.eq.s32.totalorder %s14, 0
      %p36 = por %p34, %p35
      %s37 = ssub.s32 %s8, %s15
      %p38 = scmp.eq.s32.totalorder %s37, 0
      %s40 = sadd.s32 %s39, 1
      %s41 = scalar_select %p38, %s39, %s40
      %p44 = pneg %p38
      %p45 = scmp.eq.s32.totalorder %s8, 1
      %p46 = por %p44, %p45
      %p47 = scmp.ne.s32.totalorder %s39, %s42
      %p48 = scmp.eq.s32.totalorder %s8, 0
      %p49 = por %p47, %p48
      %p50 = scmp.ne.s32.totalorder %s39, %s42
      %p51 = scmp.eq.s32.totalorder %s13, 1
      %p52 = por %p50, %p51
      %p53 = scmp.ne.s32.totalorder %s42, %s43
      %p54 = scmp.eq.s32.totalorder %s13, 0
      %p55 = por %p53, %p54
      %p56 = scmp.ne.s32.totalorder %s42, %s43
      %p57 = scmp.eq.s32.totalorder %s14, 1
      %p58 = por %p56, %p57
      %p60 = scmp.ne.s32.totalorder %s43, %s59
      %p61 = scmp.eq.s32.totalorder %s14, 0
      %p62 = por %p60, %p61
      %p63 = scmp.le.s32.totalorder 1, %s8
      %p64 = scmp.lt.s32.totalorder %s8, 3
      %p65 = pnand %p63, %p64
      %p66 = pneg %p65
      // Predicated region
      $region9: #{tpu_custom_call.1} parent=5 // pred_check
        _
      $region10: #{tpu_custom_call.1} parent=5 // pred_check_branch
        %68 = sbr.rel (%p65) target = $region12
      $region11: #{tpu_custom_call.1} parent=5 // pred_region
        %s69 = ssub.s32 %s8, 1
        // Predicated region
        $region13: #{tpu_custom_call.1} parent=11 // pred_check
          %p70 = pneg %p29
        $region14: #{tpu_custom_call.1} parent=11 // pred_check_branch
          %72 = sbr.rel (%p70) target = $region16
        $region15: #{tpu_custom_call.1} parent=11 // pred_region
          %s74 = ssub.s32 16, 16
          %75 = vsyncadd [#allocation3], %s74
          %s77 = sshll.u32 [#allocation2], 4
          %s78 = int_to_ptr.vmem [resolvable:$true] %s77
          %80 = dma.hbm_to_vmem [thread:$0]  %s0, 16, %s78, [#allocation3]
        $region16: #{tpu_custom_call.1} parent=11 // pred_fallthru
          _
      $region12: #{tpu_custom_call.1} parent=5 // pred_fallthru
        _
      %p81 = scmp.lt.s32.totalorder %s8, 2
      // Predicated region
      $region17: #{tpu_custom_call.1} parent=5 // pred_check
        %p82 = pneg %p81
      $region18: #{tpu_custom_call.1} parent=5 // pred_check_branch
        %84 = sbr.rel (%p82) target = $region20
      $region19: #{tpu_custom_call.1} parent=5 // pred_region
        _
      $region20: #{tpu_custom_call.1} parent=5 // pred_fallthru
        _
      %p85 = scmp.le.s32.totalorder 1, %s8
      %p86 = scmp.lt.s32.totalorder %s8, 3
      %p87 = pnand %p85, %p86
      %p88 = pneg %p87
      // Predicated region
      $region21: #{tpu_custom_call.1} parent=5 // pred_check
        _
      $region22: #{tpu_custom_call.1} parent=5 // pred_check_branch
        %90 = sbr.rel (%p87) target = $region24
      $region23: #{tpu_custom_call.1} parent=5 // pred_region
        %s91 = ssub.s32 %s8, 1
        // Predicated region
        $region25: #{tpu_custom_call.1} parent=23 // pred_check
          %p92 = pneg %p29
        $region26: #{tpu_custom_call.1} parent=23 // pred_check_branch
          %94 = sbr.rel (%p92) target = $region28
        $region27: #{tpu_custom_call.1} parent=23 // pred_region
          %95 = dma.done [#allocation3], 16
        $region28: #{tpu_custom_call.1} parent=23 // pred_fallthru
          _
        %p96 = pneg %p29
        %p97 = pneg %p26
        %p98 = pneg %p55
        %p99 = pneg %p52
        %s100 = sand.u32 %s42, 1
        %s101 = sand.u32 %s42, 1
        %s102 = smul.addr %s101, 104
        %s103 = scalar_lea.vmem [#allocation4], %s102
        %s104 = smul.u32 13, %s13
        %s105 = ssub.s32 25, %s104
        %p106 = scmp.lt.s32.totalorder %s105, 13
        %s107 = scalar_select %p106, %s105, 13
        %s108 = smul.u32 128, %s107
        %v109 = vld [vmem:[#allocation2] sm:$0x1]
        %v111 = vlaneseq
        %v112 = vshrl.u32 %v111, 7
        %v113 = vsub.s32 0, %v112
        %v114 = vrot.slane %v109, %v113
        %vm116 = vcmask 31744
        %117 = vst.msk [vmem:[%s103] sm:$0xff] %vm116, %v114
        %118 = vst.msk [vmem:[%s103 + $0x8] sm:$0xff] %vm116, %v114
        %119 = vst.msk [vmem:[%s103 + $0x10] sm:$0xff] %vm116, %v114
        %120 = vst.msk [vmem:[%s103 + $0x18] sm:$0xff] %vm116, %v114
        %121 = vst.msk [vmem:[%s103 + $0x20] sm:$0xff] %vm116, %v114
        %122 = vst.msk [vmem:[%s103 + $0x28] sm:$0xff] %vm116, %v114
        %123 = vst.msk [vmem:[%s103 + $0x30] sm:$0xff] %vm116, %v114
        %124 = vst.msk [vmem:[%s103 + $0x38] sm:$0xff] %vm116, %v114
        %125 = vst.msk [vmem:[%s103 + $0x40] sm:$0xff] %vm116, %v114
        %126 = vst.msk [vmem:[%s103 + $0x48] sm:$0xff] %vm116, %v114
        %127 = vst.msk [vmem:[%s103 + $0x50] sm:$0xff] %vm116, %v114
        %128 = vst.msk [vmem:[%s103 + $0x58] sm:$0xff] %vm116, %v114
        %129 = vst.msk [vmem:[%s103 + $0x60] sm:$0xff] %vm116, %v114
        %s130 = sand.u32 %s42, 1
        %s131 = sand.u32 %s42, 1
        %s132 = smul.addr %s131, 104
        %s133 = scalar_lea.vmem [#allocation4], %s132
        // Predicated region
        $region29: #{tpu_custom_call.1} parent=23 // pred_check
          %p134 = pneg %p52
        $region30: #{tpu_custom_call.1} parent=23 // pred_check_branch
          %136 = sbr.rel (%p134) target = $region32
        $region31: #{tpu_custom_call.1} parent=23 // pred_region
          %s137 = smul.u32 13, %s13
          %s138 = ssub.s32 25, %s137
          %p139 = scmp.lt.s32.totalorder %s138, 13
          %s140 = scalar_select %p139, %s138, 13
          %s141 = smul.u32 128, %s140
          %p142 = scmp.ne.s32.totalorder 0, %s141
          %s143 = smul.addr %s137, 8
          %s144 = scalar_lea.vmem %s1, %s143
          // Predicated region
          $region33: #{tpu_custom_call.1} parent=31 // pred_check
            %p145 = pneg %p142
          $region34: #{tpu_custom_call.1} parent=31 // pred_check_branch
            %147 = sbr.rel (%p145) target = $region36
          $region35: #{tpu_custom_call.1} parent=31 // pred_region
            // Predicated region
            $region37: #{tpu_custom_call.1} parent=35 // pred_check
              _
            $region38: #{tpu_custom_call.1} parent=35 // pred_check_branch
              %149 = sbr.rel (0) target = $region40
            $region39: #{tpu_custom_call.1} parent=35 // pred_region
              // Predicated region
              $region59: #{tpu_custom_call.1} parent=39 // pred_check
                _
              $region60: #{tpu_custom_call.1} parent=39 // pred_check_branch
                %224 = sbr.rel (0) target = $region62
              $region61: #{tpu_custom_call.1} parent=39 // pred_region
                %s225 = sdiv.u32.pop %s140, 13
                %s226 = srem.u32.pop %s140, 13
                // While loop
                $region63: #{tpu_custom_call.1} parent=61 // loop_pre_header
                  _
                $region64: #{tpu_custom_call.1} parent=61 // loop_header
                  %s228 = sphi 0, %s230
                  %p229 = scmp.ge.s32.totalorder %s228, %s225
                  %s233 = sphi 0, %s264
                  %s234 = sphi %s133, %s267
                  %s235 = sphi %s144, %s268
                $region65: #{tpu_custom_call.1} parent=61 // loop_header_branch
                  %232 = sbr.rel (%p229) target = $region69
                $region66: #{tpu_custom_call.1} parent=61 // loop_body
                  %v236 = vld [vmem:[%s234] sm:$0xff]
                  %237 = vst [vmem:[%s235] sm:$0xff] %v236
                  %v238 = vld [vmem:[%s234 + $0x8] sm:$0xff]
                  %239 = vst [vmem:[%s235 + $0x8] sm:$0xff] %v238
                  %v240 = vld [vmem:[%s234 + $0x10] sm:$0xff]
                  %241 = vst [vmem:[%s235 + $0x10] sm:$0xff] %v240
                  %v242 = vld [vmem:[%s234 + $0x18] sm:$0xff]
                  %243 = vst [vmem:[%s235 + $0x18] sm:$0xff] %v242
                  %v244 = vld [vmem:[%s234 + $0x20] sm:$0xff]
                  %245 = vst [vmem:[%s235 + $0x20] sm:$0xff] %v244
                  %v246 = vld [vmem:[%s234 + $0x28] sm:$0xff]
                  %247 = vst [vmem:[%s235 + $0x28] sm:$0xff] %v246
                  %v248 = vld [vmem:[%s234 + $0x30] sm:$0xff]
                  %249 = vst [vmem:[%s235 + $0x30] sm:$0xff] %v248
                  %v250 = vld [vmem:[%s234 + $0x38] sm:$0xff]
                  %251 = vst [vmem:[%s235 + $0x38] sm:$0xff] %v250
                  %v252 = vld [vmem:[%s234 + $0x40] sm:$0xff]
                  %253 = vst [vmem:[%s235 + $0x40] sm:$0xff] %v252
                  %v254 = vld [vmem:[%s234 + $0x48] sm:$0xff]
                  %255 = vst [vmem:[%s235 + $0x48] sm:$0xff] %v254
                  %v256 = vld [vmem:[%s234 + $0x50] sm:$0xff]
                  %257 = vst [vmem:[%s235 + $0x50] sm:$0xff] %v256
                  %v258 = vld [vmem:[%s234 + $0x58] sm:$0xff]
                  %259 = vst [vmem:[%s235 + $0x58] sm:$0xff] %v258
                  %v260 = vld [vmem:[%s234 + $0x60] sm:$0xff]
                  %261 = vst [vmem:[%s235 + $0x60] sm:$0xff] %v260
                  %s262 = sadd.s32 1, %s233
                  %p263 = scmp.ge.s32.totalorder %s262, %s225
                  %s264 = scalar_select %p263, 0, %s262
                  %s265 = smul.u32 %s264, 104
                  %s266 = smul.u32 %s264, 104
                  %s267 = scalar_lea.vmem %s133, %s265 [#allocation4]
                  %s268 = scalar_lea.vmem %s144, %s266
                $region67: #{tpu_custom_call.1} parent=61 // loop_footer
                  %s230 = sadd.s32 %s228, 1
                $region68: #{tpu_custom_call.1} parent=61 // loop_footer_branch
                  %227 = sbr.rel target = $region64
                $region69: #{tpu_custom_call.1} parent=61 // loop_exit
                  _
                %s269 = sdiv.u32.pop %s140, 13
                %s270 = srem.u32.pop %s140, 13
                %s271 = smul.u32 %s269, 13
                %s272 = smul.u32 8, %s271
                %s273 = scalar_lea.vmem %s133, %s272 [#allocation4]
                %s274 = smul.u32 8, %s271
                %s275 = scalar_lea.vmem %s144, %s274
                // While loop
                $region70: #{tpu_custom_call.1} parent=61 // loop_pre_header
                  _
                $region71: #{tpu_custom_call.1} parent=61 // loop_header
                  %s277 = sphi 0, %s279
                  %p278 = scmp.ge.s32.totalorder %s277, %s270
                  %s282 = sphi 0, %s289
                  %s283 = sphi %s273, %s292
                  %s284 = sphi %s275, %s293
                $region72: #{tpu_custom_call.1} parent=61 // loop_header_branch
                  %281 = sbr.rel (%p278) target = $region76
                $region73: #{tpu_custom_call.1} parent=61 // loop_body
                  %v285 = vld [vmem:[%s283] sm:$0xff]
                  %286 = vst [vmem:[%s284] sm:$0xff] %v285
                  %s287 = sadd.s32 1, %s282
                  %p288 = scmp.ge.s32.totalorder %s287, %s270
                  %s289 = scalar_select %p288, 0, %s287
                  %s290 = smul.u32 %s289, 8
                  %s291 = smul.u32 %s289, 8
                  %s292 = scalar_lea.vmem %s273, %s290 [#allocation4]
                  %s293 = scalar_lea.vmem %s275, %s291
                $region74: #{tpu_custom_call.1} parent=61 // loop_footer
                  %s279 = sadd.s32 %s277, 1
                $region75: #{tpu_custom_call.1} parent=61 // loop_footer_branch
                  %276 = sbr.rel target = $region71
                $region76: #{tpu_custom_call.1} parent=61 // loop_exit
                  _
              $region62: #{tpu_custom_call.1} parent=39 // pred_fallthru
                _
              // Predicated region
              $region77: #{tpu_custom_call.1} parent=39 // pred_check
                _
              $region78: #{tpu_custom_call.1} parent=39 // pred_check_branch
                %295 = sbr.rel target = $region80
              $region79: #{tpu_custom_call.1} parent=39 // pred_region
                _
              $region80: #{tpu_custom_call.1} parent=39 // pred_fallthru
                _
            $region40: #{tpu_custom_call.1} parent=35 // pred_fallthru
              _
            // Predicated region
            $region41: #{tpu_custom_call.1} parent=35 // pred_check
              _
            $region42: #{tpu_custom_call.1} parent=35 // pred_check_branch
              %151 = sbr.rel target = $region44
            $region43: #{tpu_custom_call.1} parent=35 // pred_region
              %s153 = ssub.s32 256, 1
              %s154 = sdiv.u32.pop %s140, 13
              %s155 = srem.u32.pop %s140, 13
              // While loop
              $region45: #{tpu_custom_call.1} parent=43 // loop_pre_header
                _
              $region46: #{tpu_custom_call.1} parent=43 // loop_header
                %s157 = sphi 0, %s159
                %p158 = scmp.ge.s32.totalorder %s157, %s154
                %s162 = sphi 0, %s193
                %s163 = sphi %s133, %s196
                %s164 = sphi %s144, %s197
              $region47: #{tpu_custom_call.1} parent=43 // loop_header_branch
                %161 = sbr.rel (%p158) target = $region51
              $region48: #{tpu_custom_call.1} parent=43 // loop_body
                %v165 = vld [vmem:[%s163] sm:%s153]
                %166 = vst [vmem:[%s164] sm:%s153] %v165
                %v167 = vld [vmem:[%s163 + $0x8] sm:%s153]
                %168 = vst [vmem:[%s164 + $0x8] sm:%s153] %v167
                %v169 = vld [vmem:[%s163 + $0x10] sm:%s153]
                %170 = vst [vmem:[%s164 + $0x10] sm:%s153] %v169
                %v171 = vld [vmem:[%s163 + $0x18] sm:%s153]
                %172 = vst [vmem:[%s164 + $0x18] sm:%s153] %v171
                %v173 = vld [vmem:[%s163 + $0x20] sm:%s153]
                %174 = vst [vmem:[%s164 + $0x20] sm:%s153] %v173
                %v175 = vld [vmem:[%s163 + $0x28] sm:%s153]
                %176 = vst [vmem:[%s164 + $0x28] sm:%s153] %v175
                %v177 = vld [vmem:[%s163 + $0x30] sm:%s153]
                %178 = vst [vmem:[%s164 + $0x30] sm:%s153] %v177
                %v179 = vld [vmem:[%s163 + $0x38] sm:%s153]
                %180 = vst [vmem:[%s164 + $0x38] sm:%s153] %v179
                %v181 = vld [vmem:[%s163 + $0x40] sm:%s153]
                %182 = vst [vmem:[%s164 + $0x40] sm:%s153] %v181
                %v183 = vld [vmem:[%s163 + $0x48] sm:%s153]
                %184 = vst [vmem:[%s164 + $0x48] sm:%s153] %v183
                %v185 = vld [vmem:[%s163 + $0x50] sm:%s153]
                %186 = vst [vmem:[%s164 + $0x50] sm:%s153] %v185
                %v187 = vld [vmem:[%s163 + $0x58] sm:%s153]
                %188 = vst [vmem:[%s164 + $0x58] sm:%s153] %v187
                %v189 = vld [vmem:[%s163 + $0x60] sm:%s153]
                %190 = vst [vmem:[%s164 + $0x60] sm:%s153] %v189
                %s191 = sadd.s32 1, %s162
                %p192 = scmp.ge.s32.totalorder %s191, %s154
                %s193 = scalar_select %p192, 0, %s191
                %s194 = smul.u32 %s193, 104
                %s195 = smul.u32 %s193, 104
                %s196 = scalar_lea.vmem %s133, %s194 [#allocation4]
                %s197 = scalar_lea.vmem %s144, %s195
              $region49: #{tpu_custom_call.1} parent=43 // loop_footer
                %s159 = sadd.s32 %s157, 1
              $region50: #{tpu_custom_call.1} parent=43 // loop_footer_branch
                %156 = sbr.rel target = $region46
              $region51: #{tpu_custom_call.1} parent=43 // loop_exit
                _
              %s198 = sdiv.u32.pop %s140, 13
              %s199 = srem.u32.pop %s140, 13
              %s200 = smul.u32 %s198, 13
              %s201 = smul.u32 8, %s200
              %s202 = scalar_lea.vmem %s133, %s201 [#allocation4]
              %s203 = smul.u32 8, %s200
              %s204 = scalar_lea.vmem %s144, %s203
              // While loop
              $region52: #{tpu_custom_call.1} parent=43 // loop_pre_header
                _
              $region53: #{tpu_custom_call.1} parent=43 // loop_header
                %s206 = sphi 0, %s208
                %p207 = scmp.ge.s32.totalorder %s206, %s199
                %s211 = sphi 0, %s218
                %s212 = sphi %s202, %s221
                %s213 = sphi %s204, %s222
              $region54: #{tpu_custom_call.1} parent=43 // loop_header_branch
                %210 = sbr.rel (%p207) target = $region58
              $region55: #{tpu_custom_call.1} parent=43 // loop_body
                %v214 = vld [vmem:[%s212] sm:%s153]
                %215 = vst [vmem:[%s213] sm:%s153] %v214
                %s216 = sadd.s32 1, %s211
                %p217 = scmp.ge.s32.totalorder %s216, %s199
                %s218 = scalar_select %p217, 0, %s216
                %s219 = smul.u32 %s218, 8
                %s220 = smul.u32 %s218, 8
                %s221 = scalar_lea.vmem %s202, %s219 [#allocation4]
                %s222 = scalar_lea.vmem %s204, %s220
              $region56: #{tpu_custom_call.1} parent=43 // loop_footer
                %s208 = sadd.s32 %s206, 1
              $region57: #{tpu_custom_call.1} parent=43 // loop_footer_branch
                %205 = sbr.rel target = $region53
              $region58: #{tpu_custom_call.1} parent=43 // loop_exit
                _
            $region44: #{tpu_custom_call.1} parent=35 // pred_fallthru
              _
          $region36: #{tpu_custom_call.1} parent=31 // pred_fallthru
            _
          %296 = vnop
        $region32: #{tpu_custom_call.1} parent=23 // pred_fallthru
          _
      $region24: #{tpu_custom_call.1} parent=5 // pred_fallthru
        _
      %p297 = scmp.le.s32.totalorder 2, %s8
      // Predicated region
      $region81: #{tpu_custom_call.1} parent=5 // pred_check
        %p298 = pneg %p297
      $region82: #{tpu_custom_call.1} parent=5 // pred_check_branch
        %300 = sbr.rel (%p298) target = $region84
      $region83: #{tpu_custom_call.1} parent=5 // pred_region
        %s301 = ssub.s32 %s8, 2
        // Predicated region
        $region85: #{tpu_custom_call.1} parent=83 // pred_check
          %p302 = pneg %p58
        $region86: #{tpu_custom_call.1} parent=83 // pred_check_branch
          %304 = sbr.rel (%p302) target = $region88
        $region87: #{tpu_custom_call.1} parent=83 // pred_region
          %s305 = sand.u32 %s43, 1
          %s306 = sand.u32 %s43, 1
          %s307 = smul.addr %s306, 104
          %s308 = scalar_lea.vmem [#allocation4], %s307
        $region88: #{tpu_custom_call.1} parent=83 // pred_fallthru
          _
      $region84: #{tpu_custom_call.1} parent=5 // pred_fallthru
        _
    $region6: #{tpu_custom_call.1} parent=1 // loop_footer
      %s12 = sadd.s32 1, %s8
    $region7: #{tpu_custom_call.1} parent=1 // loop_footer_branch
      %7 = sbr.rel target = $region3
    $region8: #{tpu_custom_call.1} parent=1 // loop_exit
      _
    %309 = vsyncpa [#allocation3], 1
    %s310 = scalar_lea.sflag [#allocation3], 1
    %311 = vsyncpa %s310, 1

</llo_original>
